<compile_context>
chip_gen: v7x
topology: tpu7x:2x2x1
jax: 0.10.0
libtpu: 0.0.40
codegen_flags: <defaults>
</compile_context>

<pallas_src>
import jax
import jax.numpy as jnp
from jax.experimental import pallas as pl
from jax.experimental.pallas import tpu as pltpu


# -----------------------------------------------------------------------------
# Kernel
# -----------------------------------------------------------------------------
def _discriminator_kernel(x_ref, w1_ref, b1_ref, w2_ref, b2_ref,
                          w3_ref, b3_ref, o_ref):
    x = x_ref[...]                                                   # (TB, D) bf16

    # Layer 1: Linear(D, 512) + LeakyReLU(0.2). bf16 MXU, f32 accumulate.
    h1 = jnp.dot(x, w1_ref[...], preferred_element_type=jnp.float32) + b1_ref[...]
    h1 = jnp.where(h1 > 0, h1, 0.2 * h1)

    # Layer 2: Linear(512, 256) + LeakyReLU(0.2). bf16 MXU, f32 accumulate.
    h2 = jnp.dot(h1.astype(jnp.bfloat16), w2_ref[...],
                 preferred_element_type=jnp.float32) + b2_ref[...]
    h2 = jnp.where(h2 > 0, h2, 0.2 * h2)

    # Layer 3: Linear(256, 1) as VPU multiply + lane reduce (skip degenerate
    # N=1 MXU pass). w3 is passed as a (1, 256) row (== PyTorch weight layout).
    logit = jnp.sum(h2 * w3_ref[...], axis=-1, keepdims=True) + b3_ref[...]

    # Sigmoid: exp and the approximate reciprocal both run on the EUP slot.
    o_ref[...] = pl.reciprocal(1.0 + jnp.exp(-logit), approx=True)


# -----------------------------------------------------------------------------
# Wrapper
# -----------------------------------------------------------------------------
def _round_up(n, m):
    return ((n + m - 1) // m) * m


def _vmem_estimate_bytes(tile_b, d):
    # resident weights (double-buffered by the pipeline) + io tiles + activations
    weights = 2 * (d * 512 * 2 + 512 * 256 * 2) + 2 * (512 + 256 + 256 + 1) * 4
    io = 2 * tile_b * d * 2 + 2 * tile_b * 4
    act = tile_b * (512 + 256 + 256) * 4
    return weights + io + act


def discriminator_forward(img, params, tile_b=None):
    """img: (B, C, H, W) float32. Returns validity (B, 1) float32."""
    B = img.shape[0]
    x = img.reshape(B, -1)                                           # (B, D)
    D = x.shape[1]
    w1, b1, w2, b2, w3_row, b3 = params

    # --- tile sizing -----------------------------------------------------------
    if tile_b is None:
        tile_b = min(512, _round_up(B, 16))          # multiple of 16 for bf16 rows
        while tile_b > 16 and _vmem_estimate_bytes(tile_b, D) > 40 * 1024 * 1024:
            tile_b //= 2
    B_pad = _round_up(B, tile_b)
    if B_pad != B:
        x = jnp.pad(x, ((0, B_pad - B), (0, 0)))
    grid = (B_pad // tile_b,)

    # --- bf16 inputs for the MXU (f32 accumulation inside the kernel) ----------
    x_bf = x.astype(jnp.bfloat16)
    w1_bf = w1.astype(jnp.bfloat16)
    w2_bf = w2.astype(jnp.bfloat16)

    # --- scoped VMEM limit only if the resident weights need it ----------------
    est = _vmem_estimate_bytes(tile_b, D)
    vmem_limit = None
    if est > 30 * 1024 * 1024:
        vmem_limit = int(min(est + 8 * 1024 * 1024, 56 * 1024 * 1024))

    # --- cost estimate for the XLA scheduler -----------------------------------
    flops = 2 * B_pad * (D * 512 + 512 * 256 + 256)
    bytes_accessed = (x_bf.size * 2 + w1_bf.size * 2 + w2_bf.size * 2
                      + (512 + 256 + 256 + 1) * 4 + B_pad * 4)
    cost = pl.CostEstimate(flops=flops, transcendentals=B_pad,
                           bytes_accessed=bytes_accessed)

    out = pl.pallas_call(
        _discriminator_kernel,
        out_shape=jax.ShapeDtypeStruct((B_pad, 1), jnp.float32),
        grid_spec=pltpu.PrefetchScalarGridSpec(
            num_scalar_prefetch=0,
            grid=grid,
            in_specs=[
                pl.BlockSpec((tile_b, D), lambda i: (i, 0)),     # x tile (pipelined)
                pl.BlockSpec((D, 512),   lambda i: (0, 0)),      # w1 (resident)
                pl.BlockSpec((1, 512),   lambda i: (0, 0)),      # b1
                pl.BlockSpec((512, 256), lambda i: (0, 0)),      # w2
                pl.BlockSpec((1, 256),   lambda i: (0, 0)),      # b2
                pl.BlockSpec((1, 256),   lambda i: (0, 0)),      # w3 row
                pl.BlockSpec((1, 1),     lambda i: (0, 0)),      # b3
            ],
            out_specs=pl.BlockSpec((tile_b, 1), lambda i: (i, 0)),
        ),
        compiler_params=pltpu.CompilerParams(
            dimension_semantics=("parallel",),
            vmem_limit_bytes=vmem_limit,
        ),
        cost_estimate=cost,
    )(x_bf, w1_bf, b1, w2_bf, b2, w3_row, b3)

    return out[:B]


# -----------------------------------------------------------------------------
# Params + references
# -----------------------------------------------------------------------------
def init_params(key, img_shape):
    """Deterministic init. w1/w2 stored as (in, out); w3 as a (1, 256) row
    (== PyTorch Linear(256, 1).weight layout); biases as (1, out)."""
    k1, k2, k3, k4, k5, k6 = jax.random.split(key, 6)

    def uniform(k, shape, fan_in):
        bound = 1.0 / jnp.sqrt(fan_in)
        return jax.random.uniform(k, shape, jnp.float32, -bound, bound)

    w1 = uniform(k1, (img_shape, 512), img_shape)
    b1 = uniform(k2, (1, 512), img_shape)
    w2 = uniform(k3, (512, 256), 512)
    b2 = uniform(k4, (1, 256), 512)
    w3 = uniform(k5, (1, 256), 256)           # row layout for the lane reduce
    b3 = uniform(k6, (1, 1), 256)
    return (w1, b1, w2, b2, w3, b3)


def reference_forward_f32(img, params):
    """Pure-f32 JAX reference of the PyTorch module."""
    w1, b1, w2, b2, w3_row, b3 = params
    x = img.reshape(img.shape[0], -1)
    h1 = x @ w1 + b1
    h1 = jnp.where(h1 > 0, h1, 0.2 * h1)
    h2 = h1 @ w2 + b2
    h2 = jnp.where(h2 > 0, h2, 0.2 * h2)
    h3 = jnp.sum(h2 * w3_row, axis=-1, keepdims=True) + b3
    return jax.nn.sigmoid(h3)


def reference_forward_bf16(img, params):
    """Reference matching the kernel's bf16-matmul / f32-accumulate numerics."""
    w1, b1, w2, b2, w3_row, b3 = params
    x = img.reshape(img.shape[0], -1).astype(jnp.bfloat16)
    h1 = jnp.dot(x, w1.astype(jnp.bfloat16),
                 preferred_element_type=jnp.float32) + b1
    h1 = jnp.where(h1 > 0, h1, 0.2 * h1)
    h2 = jnp.dot(h1.astype(jnp.bfloat16), w2.astype(jnp.bfloat16),
                 preferred_element_type=jnp.float32) + b2
    h2 = jnp.where(h2 > 0, h2, 0.2 * h2)
    h3 = jnp.sum(h2 * w3_row, axis=-1, keepdims=True) + b3
    return jax.nn.sigmoid(h3)


# -----------------------------------------------------------------------------
# Main
# -----------------------------------------------------------------------------
if __name__ == "__main__":
    # Small shapes: batch=2, channels=1, spatial=16x16 -> img_shape = 256.
    B, C, H, W = 2, 1, 16, 16
    D = C * H * W

    key = jax.random.PRNGKey(0)
    k_img, k_params = jax.random.split(key)
    img = jax.random.normal(k_img, (B, C, H, W), dtype=jnp.float32)
    params = init_params(k_params, D)

    out = discriminator_forward(img, params)
    out = jax.block_until_ready(out)

    ref_bf16 = reference_forward_bf16(img, params)
    ref_f32 = reference_forward_f32(img, params)

    assert out.shape == (B, 1)
    # Matches the bf16-matmul/f32-accumulate reference tightly (approx recip
    # adds ~1e-4 relative error) and the pure-f32 module semantics loosely.
    assert jnp.allclose(out, ref_bf16, atol=2e-3, rtol=2e-3)
    assert jnp.allclose(out, ref_f32, atol=2e-2, rtol=2e-2)

    print("KERNEL_OK")
</pallas_src>

<mosaic_0001>
module attributes {stable_mosaic.version = 11 : i64} {
  func.func @_discriminator_kernel(%arg0: i32, %arg1: memref<16x256xbf16, #tpu.memory_space<vmem>>, %arg2: memref<256x512xbf16, #tpu.memory_space<vmem>>, %arg3: memref<1x512xf32, #tpu.memory_space<vmem>>, %arg4: memref<512x256xbf16, #tpu.memory_space<vmem>>, %arg5: memref<1x256xf32, #tpu.memory_space<vmem>>, %arg6: memref<1x256xf32, #tpu.memory_space<vmem>>, %arg7: memref<1x1xf32, #tpu.memory_space<vmem>>, %arg8: memref<16x1xf32, #tpu.memory_space<vmem>>) attributes {dimension_semantics = [#tpu.dimension_semantics<parallel>], iteration_bounds = array<i64: 1>, scalar_prefetch = 0 : i64, scratch_operands = 0 : i64, tpu.core_type = #tpu.core_type<tc>, window_params = [{transform_indices = @transform_0, window_bounds = array<i64: 16, 256>}, {pipeline_mode = #tpu.pipeline_mode<synchronous>, transform_indices = @transform_1, window_bounds = array<i64: 256, 512>}, {pipeline_mode = #tpu.pipeline_mode<synchronous>, transform_indices = @transform_2, window_bounds = array<i64: 1, 512>}, {pipeline_mode = #tpu.pipeline_mode<synchronous>, transform_indices = @transform_3, window_bounds = array<i64: 512, 256>}, {pipeline_mode = #tpu.pipeline_mode<synchronous>, transform_indices = @transform_4, window_bounds = array<i64: 1, 256>}, {pipeline_mode = #tpu.pipeline_mode<synchronous>, transform_indices = @transform_5, window_bounds = array<i64: 1, 256>}, {pipeline_mode = #tpu.pipeline_mode<synchronous>, transform_indices = @transform_6, window_bounds = array<i64: 1, 1>}, {transform_indices = @transform_7, window_bounds = array<i64: 16, 1>}]} {
    %c0 = arith.constant 0 : index
    %c0_0 = arith.constant 0 : index
    %0 = vector.load %arg1[%c0, %c0_0] : memref<16x256xbf16, #tpu.memory_space<vmem>>, vector<16x256xbf16>
    %c0_1 = arith.constant 0 : index
    %c0_2 = arith.constant 0 : index
    %1 = vector.load %arg2[%c0_1, %c0_2] : memref<256x512xbf16, #tpu.memory_space<vmem>>, vector<256x512xbf16>
    %cst = arith.constant dense<0.000000e+00> : vector<16x512xf32>
    %2 = tpu.matmul %0, %1, %cst {dimension_numbers = #tpu.dot_dimension_numbers<[1], [0], [0], [1], [0, 0, 1, 1], [], []>} : vector<16x256xbf16>, vector<256x512xbf16>, vector<16x512xf32> -> vector<16x512xf32>
    %c0_3 = arith.constant 0 : index
    %c0_4 = arith.constant 0 : index
    %3 = vector.load %arg3[%c0_3, %c0_4] : memref<1x512xf32, #tpu.memory_space<vmem>>, vector<1x512xf32>
    %4 = vector.broadcast %3 : vector<1x512xf32> to vector<16x512xf32>
    %5 = arith.addf %2, %4 : vector<16x512xf32>
    %cst_5 = arith.constant 0.000000e+00 : f32
    %6 = vector.broadcast %cst_5 : f32 to vector<16x512xf32>
    %7 = arith.cmpf ogt, %5, %6 : vector<16x512xf32>
    %cst_6 = arith.constant 2.000000e-01 : f32
    %8 = vector.broadcast %cst_6 : f32 to vector<16x512xf32>
    %9 = arith.mulf %8, %5 : vector<16x512xf32>
    %10 = arith.select %7, %5, %9 : vector<16x512xi1>, vector<16x512xf32>
    %11 = arith.truncf %10 : vector<16x512xf32> to vector<16x512xbf16>
    %c0_7 = arith.constant 0 : index
    %c0_8 = arith.constant 0 : index
    %12 = vector.load %arg4[%c0_7, %c0_8] : memref<512x256xbf16, #tpu.memory_space<vmem>>, vector<512x256xbf16>
    %cst_9 = arith.constant dense<0.000000e+00> : vector<16x256xf32>
    %13 = tpu.matmul %11, %12, %cst_9 {dimension_numbers = #tpu.dot_dimension_numbers<[1], [0], [0], [1], [0, 0, 1, 1], [], []>} : vector<16x512xbf16>, vector<512x256xbf16>, vector<16x256xf32> -> vector<16x256xf32>
    %c0_10 = arith.constant 0 : index
    %c0_11 = arith.constant 0 : index
    %14 = vector.load %arg5[%c0_10, %c0_11] : memref<1x256xf32, #tpu.memory_space<vmem>>, vector<1x256xf32>
    %15 = vector.broadcast %14 : vector<1x256xf32> to vector<16x256xf32>
    %16 = arith.addf %13, %15 : vector<16x256xf32>
    %cst_12 = arith.constant 0.000000e+00 : f32
    %17 = vector.broadcast %cst_12 : f32 to vector<16x256xf32>
    %18 = arith.cmpf ogt, %16, %17 : vector<16x256xf32>
    %cst_13 = arith.constant 2.000000e-01 : f32
    %19 = vector.broadcast %cst_13 : f32 to vector<16x256xf32>
    %20 = arith.mulf %19, %16 : vector<16x256xf32>
    %21 = arith.select %18, %16, %20 : vector<16x256xi1>, vector<16x256xf32>
    %c0_14 = arith.constant 0 : index
    %c0_15 = arith.constant 0 : index
    %22 = vector.load %arg6[%c0_14, %c0_15] : memref<1x256xf32, #tpu.memory_space<vmem>>, vector<1x256xf32>
    %23 = vector.broadcast %22 : vector<1x256xf32> to vector<16x256xf32>
    %24 = arith.mulf %21, %23 : vector<16x256xf32>
    %cst_16 = arith.constant dense<0.000000e+00> : vector<16xf32>
    %25 = vector.multi_reduction <add>, %24, %cst_16 [1] : vector<16x256xf32> to vector<16xf32>
    %26 = vector.shape_cast %25 : vector<16xf32> to vector<16x1xf32>
    %c0_17 = arith.constant 0 : index
    %c0_18 = arith.constant 0 : index
    %27 = vector.load %arg7[%c0_17, %c0_18] : memref<1x1xf32, #tpu.memory_space<vmem>>, vector<1x1xf32>
    %28 = vector.broadcast %27 : vector<1x1xf32> to vector<16x1xf32>
    %29 = arith.addf %26, %28 : vector<16x1xf32>
    %cst_19 = arith.constant 0.000000e+00 : f32
    %30 = vector.broadcast %cst_19 : f32 to vector<16x1xf32>
    %31 = arith.subf %30, %29 : vector<16x1xf32>
    %32 = math.exp %31 : vector<16x1xf32>
    %cst_20 = arith.constant 1.000000e+00 : f32
    %33 = vector.broadcast %cst_20 : f32 to vector<16x1xf32>
    %34 = arith.addf %33, %32 : vector<16x1xf32>
    %35 = tpu.reciprocal %34 {approx = true} : vector<16x1xf32> -> vector<16x1xf32>
    %c0_21 = arith.constant 0 : index
    %c0_22 = arith.constant 0 : index
    %36 = vector.load %arg8[%c0_21, %c0_22] : memref<16x1xf32, #tpu.memory_space<vmem>>, vector<16x1xf32>
    tpu.vector_store %arg8[%c0_21, %c0_22], %35 {strides = array<i32>} : memref<16x1xf32, #tpu.memory_space<vmem>>, vector<16x1xf32>,
    return
  }
  func.func @transform_0(%arg0: i32) -> (i32, i32) {
    %c0_i32 = arith.constant 0 : i32
    %c0_i32_0 = arith.constant 0 : i32
    return %arg0, %c0_i32 : i32, i32
  }
  func.func @transform_1(%arg0: i32) -> (i32, i32) {
    %c0_i32 = arith.constant 0 : i32
    %c0_i32_0 = arith.constant 0 : i32
    %c0_i32_1 = arith.constant 0 : i32
    return %c0_i32, %c0_i32_0 : i32, i32
  }
  func.func @transform_2(%arg0: i32) -> (i32, i32) {
    %c0_i32 = arith.constant 0 : i32
    %c0_i32_0 = arith.constant 0 : i32
    %c0_i32_1 = arith.constant 0 : i32
    return %c0_i32, %c0_i32_0 : i32, i32
  }
  func.func @transform_3(%arg0: i32) -> (i32, i32) {
    %c0_i32 = arith.constant 0 : i32
    %c0_i32_0 = arith.constant 0 : i32
    %c0_i32_1 = arith.constant 0 : i32
    return %c0_i32, %c0_i32_0 : i32, i32
  }
  func.func @transform_4(%arg0: i32) -> (i32, i32) {
    %c0_i32 = arith.constant 0 : i32
    %c0_i32_0 = arith.constant 0 : i32
    %c0_i32_1 = arith.constant 0 : i32
    return %c0_i32, %c0_i32_0 : i32, i32
  }
  func.func @transform_5(%arg0: i32) -> (i32, i32) {
    %c0_i32 = arith.constant 0 : i32
    %c0_i32_0 = arith.constant 0 : i32
    %c0_i32_1 = arith.constant 0 : i32
    return %c0_i32, %c0_i32_0 : i32, i32
  }
  func.func @transform_6(%arg0: i32) -> (i32, i32) {
    %c0_i32 = arith.constant 0 : i32
    %c0_i32_0 = arith.constant 0 : i32
    %c0_i32_1 = arith.constant 0 : i32
    return %c0_i32, %c0_i32_0 : i32, i32
  }
  func.func @transform_7(%arg0: i32) -> (i32, i32) {
    %c0_i32 = arith.constant 0 : i32
    %c0_i32_0 = arith.constant 0 : i32
    return %arg0, %c0_i32 : i32, i32
  }
}

</mosaic_0001>

<llo_original>
// kernel: tpu_custom_call.1
$region0: #{tpu_custom_call.1}
  #allocation0 [shape = 'u32[]', space=smem, size = 0x4, offset = 0x4, fixed_abs, tag = 'smem constant byte address 0x4 - core index']
  #allocation1 [shape = 'u32[144,128]{1,0:T(1,128)}', space=vmem, size = 0x12000, scoped, tag = 'internal scratch']
  #allocation2 [shape = 'f32[1,1]{1,0:T(1,128)S(1)}', space=vmem, size = 0x200, scoped, tag = 'scoped memory for tpu_custom_call.1']
  %s0 = inlined_call_operand.hbm [shape: bf16[16,256], index: 0, kind: input, shape index: {}]
  %s1 = inlined_call_operand.hbm [shape: bf16[256,512], index: 1, kind: input, shape index: {}]
  %s2 = inlined_call_operand.vmem [shape: f32[1,512], index: 2, kind: input, shape index: {}]
  %s3 = inlined_call_operand.hbm [shape: bf16[512,256], index: 3, kind: input, shape index: {}]
  %s4 = inlined_call_operand.vmem [shape: f32[1,256], index: 4, kind: input, shape index: {}]
  %s5 = inlined_call_operand.vmem [shape: f32[1,256], index: 5, kind: input, shape index: {}]
  %s6 = inlined_call_operand.<no memory space> [shape: f32[1,1], index: 6, kind: input, shape index: {}]
  %s7 = inlined_call_operand.vmem [shape: f32[16,1], index: 7, kind: output, shape index: {}]
  %s8 = sld [smem:[#allocation0]]
  $region50: #{tpu_custom_call.1} parent=0
    _
  %s10 = ssub.s32 1, %s8
  %s11 = scalar_select 0, %s10, %s8
  %v12 = vstv %s6
  %13 = vst [vmem:[#allocation2] sm:$0x1] %v12
  $region1: #{tpu_custom_call.1} parent=0
    #allocation3 [shape = 'u8[8192]{0}', space=vmem, size = 0x2000, scoped, tag = 'input window, operand 0, single buffered']
    #allocation4 [shape = 's32[1]{0}', space=sflag, size = 0x4, scoped, tag = 'scoped memory for tpu_custom_call.1']
    #allocation5 [shape = 'u8[262144]{0}', space=vmem, size = 0x40000, scoped, tag = 'input window, operand 1, single buffered']
    #allocation6 [shape = 's32[1]{0}', space=sflag, size = 0x4, scoped, tag = 'scoped memory for tpu_custom_call.1']
    #allocation7 [shape = 'u8[262144]{0}', space=vmem, size = 0x40000, scoped, tag = 'input window, operand 3, single buffered']
    %14 = vsyncpa [#allocation4], 0
    %15 = vsyncpa [#allocation6], 0
    // Predicated region
    $region2: #{tpu_custom_call.1} parent=1 // pred_check
      _
    $region3: #{tpu_custom_call.1} parent=1 // pred_check_branch
      %17 = sbr.rel (0) target = $region5
    $region4: #{tpu_custom_call.1} parent=1 // pred_region
      %s19 = ssub.s32 256, 256
      %20 = vsyncadd [#allocation4], %s19
      %s21 = sshll.u32 [#allocation3], 4
      %s22 = int_to_ptr.vmem [resolvable:$true] %s21
      %27 = dma.hbm_to_vmem [thread:$0]  %s0, 256, %s22, [#allocation4], 128, 128, 8
    $region5: #{tpu_custom_call.1} parent=1 // pred_fallthru
      _
    // Predicated region
    $region6: #{tpu_custom_call.1} parent=1 // pred_check
      _
    $region7: #{tpu_custom_call.1} parent=1 // pred_check_branch
      %29 = sbr.rel (0) target = $region9
    $region8: #{tpu_custom_call.1} parent=1 // pred_region
      %s31 = ssub.s32 8192, 8192
      %32 = vsyncadd [#allocation6], %s31
      %s33 = sshll.u32 [#allocation5], 4
      %s34 = int_to_ptr.vmem [resolvable:$true] %s33
      %39 = dma.hbm_to_vmem [thread:$0]  %s1, 8192, %s34, [#allocation6], 256, 256, 16
    $region9: #{tpu_custom_call.1} parent=1 // pred_fallthru
      _
    // Predicated region
    $region10: #{tpu_custom_call.1} parent=1 // pred_check
      _
    $region11: #{tpu_custom_call.1} parent=1 // pred_check_branch
      %41 = sbr.rel (0) target = $region13
    $region12: #{tpu_custom_call.1} parent=1 // pred_region
      _
    $region13: #{tpu_custom_call.1} parent=1 // pred_fallthru
      _
    // Predicated region
    $region14: #{tpu_custom_call.1} parent=1 // pred_check
      _
    $region15: #{tpu_custom_call.1} parent=1 // pred_check_branch
      %43 = sbr.rel (0) target = $region17
    $region16: #{tpu_custom_call.1} parent=1 // pred_region
      %s45 = ssub.s32 8192, 8192
      %46 = vsyncadd [#allocation6], %s45
      %s47 = sshll.u32 [#allocation7], 4
      %s48 = int_to_ptr.vmem [resolvable:$true] %s47
      %53 = dma.hbm_to_vmem [thread:$0]  %s3, 8192, %s48, [#allocation6], 128, 128, 8
    $region17: #{tpu_custom_call.1} parent=1 // pred_fallthru
      _
    // Predicated region
    $region18: #{tpu_custom_call.1} parent=1 // pred_check
      _
    $region19: #{tpu_custom_call.1} parent=1 // pred_check_branch
      %55 = sbr.rel (0) target = $region21
    $region20: #{tpu_custom_call.1} parent=1 // pred_region
      _
    $region21: #{tpu_custom_call.1} parent=1 // pred_fallthru
      _
    // Predicated region
    $region22: #{tpu_custom_call.1} parent=1 // pred_check
      _
    $region23: #{tpu_custom_call.1} parent=1 // pred_check_branch
      %57 = sbr.rel (0) target = $region25
    $region24: #{tpu_custom_call.1} parent=1 // pred_region
      _
    $region25: #{tpu_custom_call.1} parent=1 // pred_fallthru
      _
    // Predicated region
    $region26: #{tpu_custom_call.1} parent=1 // pred_check
      _
    $region27: #{tpu_custom_call.1} parent=1 // pred_check_branch
      %59 = sbr.rel (0) target = $region29
    $region28: #{tpu_custom_call.1} parent=1 // pred_region
      _
    $region29: #{tpu_custom_call.1} parent=1 // pred_fallthru
      _
    // Predicated region
    $region30: #{tpu_custom_call.1} parent=1 // pred_check
      _
    $region31: #{tpu_custom_call.1} parent=1 // pred_check_branch
      %61 = sbr.rel (0) target = $region33
    $region32: #{tpu_custom_call.1} parent=1 // pred_region
      %62 = dma.done [#allocation4], 256
    $region33: #{tpu_custom_call.1} parent=1 // pred_fallthru
      _
    // Predicated region
    $region34: #{tpu_custom_call.1} parent=1 // pred_check
      _
    $region35: #{tpu_custom_call.1} parent=1 // pred_check_branch
      %64 = sbr.rel (0) target = $region37
    $region36: #{tpu_custom_call.1} parent=1 // pred_region
      %65 = dma.done [#allocation6], 8192
    $region37: #{tpu_custom_call.1} parent=1 // pred_fallthru
      _
    // Predicated region
    $region38: #{tpu_custom_call.1} parent=1 // pred_check
      _
    $region39: #{tpu_custom_call.1} parent=1 // pred_check_branch
      %67 = sbr.rel (0) target = $region41
    $region40: #{tpu_custom_call.1} parent=1 // pred_region
      %68 = dma.done [#allocation6], 8192
    $region41: #{tpu_custom_call.1} parent=1 // pred_fallthru
      _
    %v69 = vld [vmem:[#allocation3] sm:$0xff]
    %v70 = vld [vmem:[#allocation3 + $0x8] sm:$0xff]
    %v71 = vld [vmem:[#allocation5] sm:$0xff]
    %v72 = vld [vmem:[#allocation5 + $0x8] sm:$0xff]
    %v73 = vld [vmem:[#allocation5 + $0x10] sm:$0xff]
    %v74 = vld [vmem:[#allocation5 + $0x18] sm:$0xff]
    %v75 = vld [vmem:[#allocation5 + $0x20] sm:$0xff]
    %v76 = vld [vmem:[#allocation5 + $0x28] sm:$0xff]
    %v77 = vld [vmem:[#allocation5 + $0x30] sm:$0xff]
    %v78 = vld [vmem:[#allocation5 + $0x38] sm:$0xff]
    %v79 = vld [vmem:[#allocation5 + $0x40] sm:$0xff]
    %v80 = vld [vmem:[#allocation5 + $0x48] sm:$0xff]
    %v81 = vld [vmem:[#allocation5 + $0x50] sm:$0xff]
    %v82 = vld [vmem:[#allocation5 + $0x58] sm:$0xff]
    %v83 = vld [vmem:[#allocation5 + $0x60] sm:$0xff]
    %v84 = vld [vmem:[#allocation5 + $0x68] sm:$0xff]
    %v85 = vld [vmem:[#allocation5 + $0x70] sm:$0xff]
    %v86 = vld [vmem:[#allocation5 + $0x78] sm:$0xff]
    %v87 = vld [vmem:[#allocation5 + $0x80] sm:$0xff]
    %v88 = vld [vmem:[#allocation5 + $0x88] sm:$0xff]
    %v89 = vld [vmem:[#allocation5 + $0x90] sm:$0xff]
    %v90 = vld [vmem:[#allocation5 + $0x98] sm:$0xff]
    %v91 = vld [vmem:[#allocation5 + $0xa0] sm:$0xff]
    %v92 = vld [vmem:[#allocation5 + $0xa8] sm:$0xff]
    %v93 = vld [vmem:[#allocation5 + $0xb0] sm:$0xff]
    %v94 = vld [vmem:[#allocation5 + $0xb8] sm:$0xff]
    %v95 = vld [vmem:[#allocation5 + $0xc0] sm:$0xff]
    %v96 = vld [vmem:[#allocation5 + $0xc8] sm:$0xff]
    %v97 = vld [vmem:[#allocation5 + $0xd0] sm:$0xff]
    %v98 = vld [vmem:[#allocation5 + $0xd8] sm:$0xff]
    %v99 = vld [vmem:[#allocation5 + $0xe0] sm:$0xff]
    %v100 = vld [vmem:[#allocation5 + $0xe8] sm:$0xff]
    %v101 = vld [vmem:[#allocation5 + $0xf0] sm:$0xff]
    %v102 = vld [vmem:[#allocation5 + $0xf8] sm:$0xff]
    %v103 = vld [vmem:[#allocation5 + $0x100] sm:$0xff]
    %v104 = vld [vmem:[#allocation5 + $0x108] sm:$0xff]
    %v105 = vld [vmem:[#allocation5 + $0x110] sm:$0xff]
    %v106 = vld [vmem:[#allocation5 + $0x118] sm:$0xff]
    %v107 = vld [vmem:[#allocation5 + $0x120] sm:$0xff]
    %v108 = vld [vmem:[#allocation5 + $0x128] sm:$0xff]
    %v109 = vld [vmem:[#allocation5 + $0x130] sm:$0xff]
    %v110 = vld [vmem:[#allocation5 + $0x138] sm:$0xff]
    %v111 = vld [vmem:[#allocation5 + $0x140] sm:$0xff]
    %v112 = vld [vmem:[#allocation5 + $0x148] sm:$0xff]
    %v113 = vld [vmem:[#allocation5 + $0x150] sm:$0xff]
    %v114 = vld [vmem:[#allocation5 + $0x158] sm:$0xff]
    %v115 = vld [vmem:[#allocation5 + $0x160] sm:$0xff]
    %v116 = vld [vmem:[#allocation5 + $0x168] sm:$0xff]
    %v117 = vld [vmem:[#allocation5 + $0x170] sm:$0xff]
    %v118 = vld [vmem:[#allocation5 + $0x178] sm:$0xff]
    %v119 = vld [vmem:[#allocation5 + $0x180] sm:$0xff]
    %v120 = vld [vmem:[#allocation5 + $0x188] sm:$0xff]
    %v121 = vld [vmem:[#allocation5 + $0x190] sm:$0xff]
    %v122 = vld [vmem:[#allocation5 + $0x198] sm:$0xff]
    %v123 = vld [vmem:[#allocation5 + $0x1a0] sm:$0xff]
    %v124 = vld [vmem:[#allocation5 + $0x1a8] sm:$0xff]
    %v125 = vld [vmem:[#allocation5 + $0x1b0] sm:$0xff]
    %v126 = vld [vmem:[#allocation5 + $0x1b8] sm:$0xff]
    %v127 = vld [vmem:[#allocation5 + $0x1c0] sm:$0xff]
    %v128 = vld [vmem:[#allocation5 + $0x1c8] sm:$0xff]
    %v129 = vld [vmem:[#allocation5 + $0x1d0] sm:$0xff]
    %v130 = vld [vmem:[#allocation5 + $0x1d8] sm:$0xff]
    %v131 = vld [vmem:[#allocation5 + $0x1e0] sm:$0xff]
    %v132 = vld [vmem:[#allocation5 + $0x1e8] sm:$0xff]
    %v133 = vld [vmem:[#allocation5 + $0x1f0] sm:$0xff]
    %v134 = vld [vmem:[#allocation5 + $0x1f8] sm:$0xff]
    %v135 = vld [vmem:[%s2] sm:$0xf]
    %v137 = vlaneseq
    %v138 = vshrl.u32 %v137, 7
    %v139 = vsub.s32 0, %v138
    %v140 = vrot.slane %v135, %v139
    %v141 = vlaneseq
    %v142 = vshrl.u32 %v141, 7
    %v143 = vsub.s32 1, %v142
    %v144 = vrot.slane %v135, %v143
    %v145 = vlaneseq
    %v146 = vshrl.u32 %v145, 7
    %v147 = vsub.s32 2, %v146
    %v148 = vrot.slane %v135, %v147
    %v149 = vlaneseq
    %v150 = vshrl.u32 %v149, 7
    %v151 = vsub.s32 3, %v150
    %v152 = vrot.slane %v135, %v151
    %v159 = vunpack.c.l.b16 %v69
    %v160 = vunpack.c.h.b16 %v69
    %v161 = vunpack.c.l.b16 %v70
    %v162 = vunpack.c.h.b16 %v70
    %v163 = vpack.c.b16 %v161, %v159
    %v164 = vpack.c.b16 %v162, %v160
    %v231 = vunpack.c.l.b16 %v71
    %v232 = vunpack.c.h.b16 %v71
    %v233 = vunpack.c.l.b16 %v72
    %v234 = vunpack.c.h.b16 %v72
    %v235 = vunpack.c.l.b16 %v73
    %v236 = vunpack.c.h.b16 %v73
    %v237 = vunpack.c.l.b16 %v74
    %v238 = vunpack.c.h.b16 %v74
    %v239 = vunpack.c.l.b16 %v75
    %v240 = vunpack.c.h.b16 %v75
    %v241 = vunpack.c.l.b16 %v76
    %v242 = vunpack.c.h.b16 %v76
    %v243 = vunpack.c.l.b16 %v77
    %v244 = vunpack.c.h.b16 %v77
    %v245 = vunpack.c.l.b16 %v78
    %v246 = vunpack.c.h.b16 %v78
    %v247 = vunpack.c.l.b16 %v79
    %v248 = vunpack.c.h.b16 %v79
    %v249 = vunpack.c.l.b16 %v80
    %v250 = vunpack.c.h.b16 %v80
    %v251 = vunpack.c.l.b16 %v81
    %v252 = vunpack.c.h.b16 %v81
    %v253 = vunpack.c.l.b16 %v82
    %v254 = vunpack.c.h.b16 %v82
    %v255 = vunpack.c.l.b16 %v83
    %v256 = vunpack.c.h.b16 %v83
    %v257 = vunpack.c.l.b16 %v84
    %v258 = vunpack.c.h.b16 %v84
    %v259 = vunpack.c.l.b16 %v85
    %v260 = vunpack.c.h.b16 %v85
    %v261 = vunpack.c.l.b16 %v86
    %v262 = vunpack.c.h.b16 %v86
    %v263 = vunpack.c.l.b16 %v87
    %v264 = vunpack.c.h.b16 %v87
    %v265 = vunpack.c.l.b16 %v88
    %v266 = vunpack.c.h.b16 %v88
    %v267 = vunpack.c.l.b16 %v89
    %v268 = vunpack.c.h.b16 %v89
    %v269 = vunpack.c.l.b16 %v90
    %v270 = vunpack.c.h.b16 %v90
    %v271 = vunpack.c.l.b16 %v91
    %v272 = vunpack.c.h.b16 %v91
    %v273 = vunpack.c.l.b16 %v92
    %v274 = vunpack.c.h.b16 %v92
    %v275 = vunpack.c.l.b16 %v93
    %v276 = vunpack.c.h.b16 %v93
    %v277 = vunpack.c.l.b16 %v94
    %v278 = vunpack.c.h.b16 %v94
    %v279 = vunpack.c.l.b16 %v95
    %v280 = vunpack.c.h.b16 %v95
    %v281 = vunpack.c.l.b16 %v96
    %v282 = vunpack.c.h.b16 %v96
    %v283 = vunpack.c.l.b16 %v97
    %v284 = vunpack.c.h.b16 %v97
    %v285 = vunpack.c.l.b16 %v98
    %v286 = vunpack.c.h.b16 %v98
    %v287 = vunpack.c.l.b16 %v99
    %v288 = vunpack.c.h.b16 %v99
    %v289 = vunpack.c.l.b16 %v100
    %v290 = vunpack.c.h.b16 %v100
    %v291 = vunpack.c.l.b16 %v101
    %v292 = vunpack.c.h.b16 %v101
    %v293 = vunpack.c.l.b16 %v102
    %v294 = vunpack.c.h.b16 %v102
    %v295 = vunpack.c.l.b16 %v103
    %v296 = vunpack.c.h.b16 %v103
    %v297 = vunpack.c.l.b16 %v104
    %v298 = vunpack.c.h.b16 %v104
    %v299 = vunpack.c.l.b16 %v105
    %v300 = vunpack.c.h.b16 %v105
    %v301 = vunpack.c.l.b16 %v106
    %v302 = vunpack.c.h.b16 %v106
    %v303 = vunpack.c.l.b16 %v107
    %v304 = vunpack.c.h.b16 %v107
    %v305 = vunpack.c.l.b16 %v108
    %v306 = vunpack.c.h.b16 %v108
    %v307 = vunpack.c.l.b16 %v109
    %v308 = vunpack.c.h.b16 %v109
    %v309 = vunpack.c.l.b16 %v110
    %v310 = vunpack.c.h.b16 %v110
    %v311 = vunpack.c.l.b16 %v111
    %v312 = vunpack.c.h.b16 %v111
    %v313 = vunpack.c.l.b16 %v112
    %v314 = vunpack.c.h.b16 %v112
    %v315 = vunpack.c.l.b16 %v113
    %v316 = vunpack.c.h.b16 %v113
    %v317 = vunpack.c.l.b16 %v114
    %v318 = vunpack.c.h.b16 %v114
    %v319 = vunpack.c.l.b16 %v115
    %v320 = vunpack.c.h.b16 %v115
    %v321 = vunpack.c.l.b16 %v116
    %v322 = vunpack.c.h.b16 %v116
    %v323 = vunpack.c.l.b16 %v117
    %v324 = vunpack.c.h.b16 %v117
    %v325 = vunpack.c.l.b16 %v118
    %v326 = vunpack.c.h.b16 %v118
    %v327 = vunpack.c.l.b16 %v119
    %v328 = vunpack.c.h.b16 %v119
    %v329 = vunpack.c.l.b16 %v120
    %v330 = vunpack.c.h.b16 %v120
    %v331 = vunpack.c.l.b16 %v121
    %v332 = vunpack.c.h.b16 %v121
    %v333 = vunpack.c.l.b16 %v122
    %v334 = vunpack.c.h.b16 %v122
    %v335 = vunpack.c.l.b16 %v123
    %v336 = vunpack.c.h.b16 %v123
    %v337 = vunpack.c.l.b16 %v124
    %v338 = vunpack.c.h.b16 %v124
    %v339 = vunpack.c.l.b16 %v125
    %v340 = vunpack.c.h.b16 %v125
    %v341 = vunpack.c.l.b16 %v126
    %v342 = vunpack.c.h.b16 %v126
    %v343 = vunpack.c.l.b16 %v127
    %v344 = vunpack.c.h.b16 %v127
    %v345 = vunpack.c.l.b16 %v128
    %v346 = vunpack.c.h.b16 %v128
    %v347 = vunpack.c.l.b16 %v129
    %v348 = vunpack.c.h.b16 %v129
    %v349 = vunpack.c.l.b16 %v130
    %v350 = vunpack.c.h.b16 %v130
    %v351 = vunpack.c.l.b16 %v131
    %v352 = vunpack.c.h.b16 %v131
    %v353 = vunpack.c.l.b16 %v132
    %v354 = vunpack.c.h.b16 %v132
    %v355 = vunpack.c.l.b16 %v133
    %v356 = vunpack.c.h.b16 %v133
    %v357 = vunpack.c.l.b16 %v134
    %v358 = vunpack.c.h.b16 %v134
    %v359 = vpack.c.b16 %v235, %v231
    %v360 = vpack.c.b16 %v236, %v232
    %v361 = vpack.c.b16 %v237, %v233
    %v362 = vpack.c.b16 %v238, %v234
    %v363 = vpack.c.b16 %v243, %v239
    %v364 = vpack.c.b16 %v244, %v240
    %v365 = vpack.c.b16 %v245, %v241
    %v366 = vpack.c.b16 %v246, %v242
    %v367 = vpack.c.b16 %v251, %v247
    %v368 = vpack.c.b16 %v252, %v248
    %v369 = vpack.c.b16 %v253, %v249
    %v370 = vpack.c.b16 %v254, %v250
    %v371 = vpack.c.b16 %v259, %v255
    %v372 = vpack.c.b16 %v260, %v256
    %v373 = vpack.c.b16 %v261, %v257
    %v374 = vpack.c.b16 %v262, %v258
    %v375 = vpack.c.b16 %v267, %v263
    %v376 = vpack.c.b16 %v268, %v264
    %v377 = vpack.c.b16 %v269, %v265
    %v378 = vpack.c.b16 %v270, %v266
    %v379 = vpack.c.b16 %v275, %v271
    %v380 = vpack.c.b16 %v276, %v272
    %v381 = vpack.c.b16 %v277, %v273
    %v382 = vpack.c.b16 %v278, %v274
    %v383 = vpack.c.b16 %v283, %v279
    %v384 = vpack.c.b16 %v284, %v280
    %v385 = vpack.c.b16 %v285, %v281
    %v386 = vpack.c.b16 %v286, %v282
    %v387 = vpack.c.b16 %v291, %v287
    %v388 = vpack.c.b16 %v292, %v288
    %v389 = vpack.c.b16 %v293, %v289
    %v390 = vpack.c.b16 %v294, %v290
    %v391 = vpack.c.b16 %v299, %v295
    %v392 = vpack.c.b16 %v300, %v296
    %v393 = vpack.c.b16 %v301, %v297
    %v394 = vpack.c.b16 %v302, %v298
    %v395 = vpack.c.b16 %v307, %v303
    %v396 = vpack.c.b16 %v308, %v304
    %v397 = vpack.c.b16 %v309, %v305
    %v398 = vpack.c.b16 %v310, %v306
    %v399 = vpack.c.b16 %v315, %v311
    %v400 = vpack.c.b16 %v316, %v312
    %v401 = vpack.c.b16 %v317, %v313
    %v402 = vpack.c.b16 %v318, %v314
    %v403 = vpack.c.b16 %v323, %v319
    %v404 = vpack.c.b16 %v324, %v320
    %v405 = vpack.c.b16 %v325, %v321
    %v406 = vpack.c.b16 %v326, %v322
    %v407 = vpack.c.b16 %v331, %v327
    %v408 = vpack.c.b16 %v332, %v328
    %v409 = vpack.c.b16 %v333, %v329
    %v410 = vpack.c.b16 %v334, %v330
    %v411 = vpack.c.b16 %v339, %v335
    %v412 = vpack.c.b16 %v340, %v336
    %v413 = vpack.c.b16 %v341, %v337
    %v414 = vpack.c.b16 %v342, %v338
    %v415 = vpack.c.b16 %v347, %v343
    %v416 = vpack.c.b16 %v348, %v344
    %v417 = vpack.c.b16 %v349, %v345
    %v418 = vpack.c.b16 %v350, %v346
    %v419 = vpack.c.b16 %v355, %v351
    %v420 = vpack.c.b16 %v356, %v352
    %v421 = vpack.c.b16 %v357, %v353
    %v422 = vpack.c.b16 %v358, %v354
    %487 = vmatprep.subr.bf16.mxu0 %v360
    %488 = vmatpush1.bf16.msra.mxu0 %v359
    %489 = vmatprep.subr.bf16.mxu0 %v364
    %490 = vmatpush1.bf16.msra.mxu0 %v363
    %491 = vmatprep.subr.bf16.mxu0 %v368
    %492 = vmatpush1.bf16.msra.mxu0 %v367
    %493 = vmatprep.subr.bf16.mxu0 %v372
    %494 = vmatpush1.bf16.msra.mxu0 %v371
    %495 = vmatprep.subr.bf16.mxu0 %v376
    %496 = vmatpush1.bf16.msra.mxu0 %v375
    %497 = vmatprep.subr.bf16.mxu0 %v380
    %498 = vmatpush1.bf16.msra.mxu0 %v379
    %499 = vmatprep.subr.bf16.mxu0 %v384
    %500 = vmatpush1.bf16.msra.mxu0 %v383
    %501 = vmatprep.subr.bf16.mxu0 %v388
    %502 = vmatpush1.bf16.msra.mxu0 %v387
    %503 = vmatprep.subr.bf16.mxu0 %v392
    %504 = vmatpush1.bf16.msra.mxu0 %v391
    %505 = vmatprep.subr.bf16.mxu0 %v396
    %506 = vmatpush1.bf16.msra.mxu0 %v395
    %507 = vmatprep.subr.bf16.mxu0 %v400
    %508 = vmatpush1.bf16.msra.mxu0 %v399
    %509 = vmatprep.subr.bf16.mxu0 %v404
    %510 = vmatpush1.bf16.msra.mxu0 %v403
    %511 = vmatprep.subr.bf16.mxu0 %v408
    %512 = vmatpush1.bf16.msra.mxu0 %v407
    %513 = vmatprep.subr.bf16.mxu0 %v412
    %514 = vmatpush1.bf16.msra.mxu0 %v411
    %515 = vmatprep.subr.bf16.mxu0 %v416
    %516 = vmatpush1.bf16.msra.mxu0 %v415
    %517 = vmatprep.subr.bf16.mxu0 %v420
    %518 = vmatpush1.bf16.msra.mxu0 %v419
    %519 = vmatprep.mubr.bf16.mxu0 %v164
    %520 = vmatmul.mubr.bf16.gmra.mrb[0].mxu0 %v163
    %v521 = vpop.f32.mrb[0].mxu0
    %v522 = vadd.f32 %v140, %v521
    %v523 = vpop.f32.mrb[0].mxu0
    %v524 = vadd.f32 %v144, %v523
    %v525 = vpop.f32.mrb[0].mxu0
    %v526 = vadd.f32 %v140, %v525
    %v527 = vpop.f32.mrb[0].mxu0
    %v528 = vadd.f32 %v144, %v527
    %529 = vdwg.mxu0
    %530 = vmatprep.subr.bf16.mxu0 %v362
    %531 = vmatpush1.bf16.msra.mxu0 %v361
    %532 = vmatprep.subr.bf16.mxu0 %v366
    %533 = vmatpush1.bf16.msra.mxu0 %v365
    %534 = vmatprep.subr.bf16.mxu0 %v370
    %535 = vmatpush1.bf16.msra.mxu0 %v369
    %536 = vmatprep.subr.bf16.mxu0 %v374
    %537 = vmatpush1.bf16.msra.mxu0 %v373
    %538 = vmatprep.subr.bf16.mxu0 %v378
    %539 = vmatpush1.bf16.msra.mxu0 %v377
    %540 = vmatprep.subr.bf16.mxu0 %v382
    %541 = vmatpush1.bf16.msra.mxu0 %v381
    %542 = vmatprep.subr.bf16.mxu0 %v386
    %543 = vmatpush1.bf16.msra.mxu0 %v385
    %544 = vmatprep.subr.bf16.mxu0 %v390
    %545 = vmatpush1.bf16.msra.mxu0 %v389
    %546 = vmatprep.subr.bf16.mxu0 %v394
    %547 = vmatpush1.bf16.msra.mxu0 %v393
    %548 = vmatprep.subr.bf16.mxu0 %v398
    %549 = vmatpush1.bf16.msra.mxu0 %v397
    %550 = vmatprep.subr.bf16.mxu0 %v402
    %551 = vmatpush1.bf16.msra.mxu0 %v401
    %552 = vmatprep.subr.bf16.mxu0 %v406
    %553 = vmatpush1.bf16.msra.mxu0 %v405
    %554 = vmatprep.subr.bf16.mxu0 %v410
    %555 = vmatpush1.bf16.msra.mxu0 %v409
    %556 = vmatprep.subr.bf16.mxu0 %v414
    %557 = vmatpush1.bf16.msra.mxu0 %v413
    %558 = vmatprep.subr.bf16.mxu0 %v418
    %559 = vmatpush1.bf16.msra.mxu0 %v417
    %560 = vmatprep.subr.bf16.mxu0 %v422
    %561 = vmatpush1.bf16.msra.mxu0 %v421
    %562 = vmatprep.mubr.bf16.mxu0 %v164
    %563 = vmatmul.mubr.bf16.gmra.mrb[0].mxu0 %v163
    %v564 = vpop.f32.mrb[0].mxu0
    %v565 = vadd.f32 %v148, %v564
    %v566 = vpop.f32.mrb[0].mxu0
    %v567 = vadd.f32 %v152, %v566
    %v568 = vpop.f32.mrb[0].mxu0
    %v569 = vadd.f32 %v148, %v568
    %v570 = vpop.f32.mrb[0].mxu0
    %v571 = vadd.f32 %v152, %v570
    %572 = vdwg.mxu0
    %vm573 = vcmp.gt.f32.partialorder %v522, 0.0
    %vm574 = vcmp.gt.f32.partialorder %v524, 0.0
    %vm575 = vcmp.gt.f32.partialorder %v565, 0.0
    %vm576 = vcmp.gt.f32.partialorder %v567, 0.0
    %vm577 = vcmp.gt.f32.partialorder %v526, 0.0
    %vm578 = vcmp.gt.f32.partialorder %v528, 0.0
    %vm579 = vcmp.gt.f32.partialorder %v569, 0.0
    %vm580 = vcmp.gt.f32.partialorder %v571, 0.0
    %v581 = vmul.f32 %v522, 0.2
    %v582 = vmul.f32 %v524, 0.2
    %v583 = vmul.f32 %v565, 0.2
    %v584 = vmul.f32 %v567, 0.2
    %v585 = vmul.f32 %v526, 0.2
    %v586 = vmul.f32 %v528, 0.2
    %v587 = vmul.f32 %v569, 0.2
    %v588 = vmul.f32 %v571, 0.2
    %v589 = vsel %vm573, %v522, %v581
    %v590 = vsel %vm574, %v524, %v582
    %v591 = vsel %vm575, %v565, %v583
    %v592 = vsel %vm576, %v567, %v584
    %v593 = vsel %vm577, %v526, %v585
    %v594 = vsel %vm578, %v528, %v586
    %v595 = vsel %vm579, %v569, %v587
    %v596 = vsel %vm580, %v571, %v588
    %v597 = vpack.c.bf16 %v593, %v589
    %v598 = vpack.c.bf16 %v594, %v590
    %v599 = vpack.c.bf16 %v595, %v591
    %v600 = vpack.c.bf16 %v596, %v592
    %v601 = vld [vmem:[#allocation7] sm:$0xff]
    %v602 = vld [vmem:[#allocation7 + $0x8] sm:$0xff]
    %v603 = vld [vmem:[#allocation7 + $0x10] sm:$0xff]
    %v604 = vld [vmem:[#allocation7 + $0x18] sm:$0xff]
    %v605 = vld [vmem:[#allocation7 + $0x20] sm:$0xff]
    %v606 = vld [vmem:[#allocation7 + $0x28] sm:$0xff]
    %v607 = vld [vmem:[#allocation7 + $0x30] sm:$0xff]
    %v608 = vld [vmem:[#allocation7 + $0x38] sm:$0xff]
    %v609 = vld [vmem:[#allocation7 + $0x40] sm:$0xff]
    %v610 = vld [vmem:[#allocation7 + $0x48] sm:$0xff]
    %v611 = vld [vmem:[#allocation7 + $0x50] sm:$0xff]
    %v612 = vld [vmem:[#allocation7 + $0x58] sm:$0xff]
    %v613 = vld [vmem:[#allocation7 + $0x60] sm:$0xff]
    %v614 = vld [vmem:[#allocation7 + $0x68] sm:$0xff]
    %v615 = vld [vmem:[#allocation7 + $0x70] sm:$0xff]
    %v616 = vld [vmem:[#allocation7 + $0x78] sm:$0xff]
    %v617 = vld [vmem:[#allocation7 + $0x80] sm:$0xff]
    %v618 = vld [vmem:[#allocation7 + $0x88] sm:$0xff]
    %v619 = vld [vmem:[#allocation7 + $0x90] sm:$0xff]
    %v620 = vld [vmem:[#allocation7 + $0x98] sm:$0xff]
    %v621 = vld [vmem:[#allocation7 + $0xa0] sm:$0xff]
    %v622 = vld [vmem:[#allocation7 + $0xa8] sm:$0xff]
    %v623 = vld [vmem:[#allocation7 + $0xb0] sm:$0xff]
    %v624 = vld [vmem:[#allocation7 + $0xb8] sm:$0xff]
    %v625 = vld [vmem:[#allocation7 + $0xc0] sm:$0xff]
    %v626 = vld [vmem:[#allocation7 + $0xc8] sm:$0xff]
    %v627 = vld [vmem:[#allocation7 + $0xd0] sm:$0xff]
    %v628 = vld [vmem:[#allocation7 + $0xd8] sm:$0xff]
    %v629 = vld [vmem:[#allocation7 + $0xe0] sm:$0xff]
    %v630 = vld [vmem:[#allocation7 + $0xe8] sm:$0xff]
    %v631 = vld [vmem:[#allocation7 + $0xf0] sm:$0xff]
    %v632 = vld [vmem:[#allocation7 + $0xf8] sm:$0xff]
    %v633 = vld [vmem:[#allocation7 + $0x100] sm:$0xff]
    %v634 = vld [vmem:[#allocation7 + $0x108] sm:$0xff]
    %v635 = vld [vmem:[#allocation7 + $0x110] sm:$0xff]
    %v636 = vld [vmem:[#allocation7 + $0x118] sm:$0xff]
    %v637 = vld [vmem:[#allocation7 + $0x120] sm:$0xff]
    %v638 = vld [vmem:[#allocation7 + $0x128] sm:$0xff]
    %v639 = vld [vmem:[#allocation7 + $0x130] sm:$0xff]
    %v640 = vld [vmem:[#allocation7 + $0x138] sm:$0xff]
    %v641 = vld [vmem:[#allocation7 + $0x140] sm:$0xff]
    %v642 = vld [vmem:[#allocation7 + $0x148] sm:$0xff]
    %v643 = vld [vmem:[#allocation7 + $0x150] sm:$0xff]
    %v644 = vld [vmem:[#allocation7 + $0x158] sm:$0xff]
    %v645 = vld [vmem:[#allocation7 + $0x160] sm:$0xff]
    %v646 = vld [vmem:[#allocation7 + $0x168] sm:$0xff]
    %v647 = vld [vmem:[#allocation7 + $0x170] sm:$0xff]
    %v648 = vld [vmem:[#allocation7 + $0x178] sm:$0xff]
    %v649 = vld [vmem:[#allocation7 + $0x180] sm:$0xff]
    %v650 = vld [vmem:[#allocation7 + $0x188] sm:$0xff]
    %v651 = vld [vmem:[#allocation7 + $0x190] sm:$0xff]
    %v652 = vld [vmem:[#allocation7 + $0x198] sm:$0xff]
    %v653 = vld [vmem:[#allocation7 + $0x1a0] sm:$0xff]
    %v654 = vld [vmem:[#allocation7 + $0x1a8] sm:$0xff]
    %v655 = vld [vmem:[#allocation7 + $0x1b0] sm:$0xff]
    %v656 = vld [vmem:[#allocation7 + $0x1b8] sm:$0xff]
    %v657 = vld [vmem:[#allocation7 + $0x1c0] sm:$0xff]
    %v658 = vld [vmem:[#allocation7 + $0x1c8] sm:$0xff]
    %v659 = vld [vmem:[#allocation7 + $0x1d0] sm:$0xff]
    %v660 = vld [vmem:[#allocation7 + $0x1d8] sm:$0xff]
    %v661 = vld [vmem:[#allocation7 + $0x1e0] sm:$0xff]
    %v662 = vld [vmem:[#allocation7 + $0x1e8] sm:$0xff]
    %v663 = vld [vmem:[#allocation7 + $0x1f0] sm:$0xff]
    %v664 = vld [vmem:[#allocation7 + $0x1f8] sm:$0xff]
    %v665 = vld [vmem:[%s4] sm:$0x3]
    %v667 = vlaneseq
    %v668 = vshrl.u32 %v667, 7
    %v669 = vsub.s32 0, %v668
    %v670 = vrot.slane %v665, %v669
    %v671 = vlaneseq
    %v672 = vshrl.u32 %v671, 7
    %v673 = vsub.s32 1, %v672
    %v674 = vrot.slane %v665, %v673
    %v741 = vunpack.c.l.b16 %v601
    %v742 = vunpack.c.h.b16 %v601
    %v743 = vunpack.c.l.b16 %v602
    %v744 = vunpack.c.h.b16 %v602
    %v745 = vunpack.c.l.b16 %v603
    %v746 = vunpack.c.h.b16 %v603
    %v747 = vunpack.c.l.b16 %v604
    %v748 = vunpack.c.h.b16 %v604
    %v749 = vunpack.c.l.b16 %v605
    %v750 = vunpack.c.h.b16 %v605
    %v751 = vunpack.c.l.b16 %v606
    %v752 = vunpack.c.h.b16 %v606
    %v753 = vunpack.c.l.b16 %v607
    %v754 = vunpack.c.h.b16 %v607
    %v755 = vunpack.c.l.b16 %v608
    %v756 = vunpack.c.h.b16 %v608
    %v757 = vunpack.c.l.b16 %v609
    %v758 = vunpack.c.h.b16 %v609
    %v759 = vunpack.c.l.b16 %v610
    %v760 = vunpack.c.h.b16 %v610
    %v761 = vunpack.c.l.b16 %v611
    %v762 = vunpack.c.h.b16 %v611
    %v763 = vunpack.c.l.b16 %v612
    %v764 = vunpack.c.h.b16 %v612
    %v765 = vunpack.c.l.b16 %v613
    %v766 = vunpack.c.h.b16 %v613
    %v767 = vunpack.c.l.b16 %v614
    %v768 = vunpack.c.h.b16 %v614
    %v769 = vunpack.c.l.b16 %v615
    %v770 = vunpack.c.h.b16 %v615
    %v771 = vunpack.c.l.b16 %v616
    %v772 = vunpack.c.h.b16 %v616
    %v773 = vunpack.c.l.b16 %v617
    %v774 = vunpack.c.h.b16 %v617
    %v775 = vunpack.c.l.b16 %v618
    %v776 = vunpack.c.h.b16 %v618
    %v777 = vunpack.c.l.b16 %v619
    %v778 = vunpack.c.h.b16 %v619
    %v779 = vunpack.c.l.b16 %v620
    %v780 = vunpack.c.h.b16 %v620
    %v781 = vunpack.c.l.b16 %v621
    %v782 = vunpack.c.h.b16 %v621
    %v783 = vunpack.c.l.b16 %v622
    %v784 = vunpack.c.h.b16 %v622
    %v785 = vunpack.c.l.b16 %v623
    %v786 = vunpack.c.h.b16 %v623
    %v787 = vunpack.c.l.b16 %v624
    %v788 = vunpack.c.h.b16 %v624
    %v789 = vunpack.c.l.b16 %v625
    %v790 = vunpack.c.h.b16 %v625
    %v791 = vunpack.c.l.b16 %v626
    %v792 = vunpack.c.h.b16 %v626
    %v793 = vunpack.c.l.b16 %v627
    %v794 = vunpack.c.h.b16 %v627
    %v795 = vunpack.c.l.b16 %v628
    %v796 = vunpack.c.h.b16 %v628
    %v797 = vunpack.c.l.b16 %v629
    %v798 = vunpack.c.h.b16 %v629
    %v799 = vunpack.c.l.b16 %v630
    %v800 = vunpack.c.h.b16 %v630
    %v801 = vunpack.c.l.b16 %v631
    %v802 = vunpack.c.h.b16 %v631
    %v803 = vunpack.c.l.b16 %v632
    %v804 = vunpack.c.h.b16 %v632
    %v805 = vunpack.c.l.b16 %v633
    %v806 = vunpack.c.h.b16 %v633
    %v807 = vunpack.c.l.b16 %v634
    %v808 = vunpack.c.h.b16 %v634
    %v809 = vunpack.c.l.b16 %v635
    %v810 = vunpack.c.h.b16 %v635
    %v811 = vunpack.c.l.b16 %v636
    %v812 = vunpack.c.h.b16 %v636
    %v813 = vunpack.c.l.b16 %v637
    %v814 = vunpack.c.h.b16 %v637
    %v815 = vunpack.c.l.b16 %v638
    %v816 = vunpack.c.h.b16 %v638
    %v817 = vunpack.c.l.b16 %v639
    %v818 = vunpack.c.h.b16 %v639
    %v819 = vunpack.c.l.b16 %v640
    %v820 = vunpack.c.h.b16 %v640
    %v821 = vunpack.c.l.b16 %v641
    %v822 = vunpack.c.h.b16 %v641
    %v823 = vunpack.c.l.b16 %v642
    %v824 = vunpack.c.h.b16 %v642
    %v825 = vunpack.c.l.b16 %v643
    %v826 = vunpack.c.h.b16 %v643
    %v827 = vunpack.c.l.b16 %v644
    %v828 = vunpack.c.h.b16 %v644
    %v829 = vunpack.c.l.b16 %v645
    %v830 = vunpack.c.h.b16 %v645
    %v831 = vunpack.c.l.b16 %v646
    %v832 = vunpack.c.h.b16 %v646
    %v833 = vunpack.c.l.b16 %v647
    %v834 = vunpack.c.h.b16 %v647
    %v835 = vunpack.c.l.b16 %v648
    %v836 = vunpack.c.h.b16 %v648
    %v837 = vunpack.c.l.b16 %v649
    %v838 = vunpack.c.h.b16 %v649
    %v839 = vunpack.c.l.b16 %v650
    %v840 = vunpack.c.h.b16 %v650
    %v841 = vunpack.c.l.b16 %v651
    %v842 = vunpack.c.h.b16 %v651
    %v843 = vunpack.c.l.b16 %v652
    %v844 = vunpack.c.h.b16 %v652
    %v845 = vunpack.c.l.b16 %v653
    %v846 = vunpack.c.h.b16 %v653
    %v847 = vunpack.c.l.b16 %v654
    %v848 = vunpack.c.h.b16 %v654
    %v849 = vunpack.c.l.b16 %v655
    %v850 = vunpack.c.h.b16 %v655
    %v851 = vunpack.c.l.b16 %v656
    %v852 = vunpack.c.h.b16 %v656
    %v853 = vunpack.c.l.b16 %v657
    %v854 = vunpack.c.h.b16 %v657
    %v855 = vunpack.c.l.b16 %v658
    %v856 = vunpack.c.h.b16 %v658
    %v857 = vunpack.c.l.b16 %v659
    %v858 = vunpack.c.h.b16 %v659
    %v859 = vunpack.c.l.b16 %v660
    %v860 = vunpack.c.h.b16 %v660
    %v861 = vunpack.c.l.b16 %v661
    %v862 = vunpack.c.h.b16 %v661
    %v863 = vunpack.c.l.b16 %v662
    %v864 = vunpack.c.h.b16 %v662
    %v865 = vunpack.c.l.b16 %v663
    %v866 = vunpack.c.h.b16 %v663
    %v867 = vunpack.c.l.b16 %v664
    %v868 = vunpack.c.h.b16 %v664
    %v869 = vpack.c.b16 %v743, %v741
    %v870 = vpack.c.b16 %v744, %v742
    %v871 = vpack.c.b16 %v747, %v745
    %v872 = vpack.c.b16 %v748, %v746
    %v873 = vpack.c.b16 %v751, %v749
    %v874 = vpack.c.b16 %v752, %v750
    %v875 = vpack.c.b16 %v755, %v753
    %v876 = vpack.c.b16 %v756, %v754
    %v877 = vpack.c.b16 %v759, %v757
    %v878 = vpack.c.b16 %v760, %v758
    %v879 = vpack.c.b16 %v763, %v761
    %v880 = vpack.c.b16 %v764, %v762
    %v881 = vpack.c.b16 %v767, %v765
    %v882 = vpack.c.b16 %v768, %v766
    %v883 = vpack.c.b16 %v771, %v769
    %v884 = vpack.c.b16 %v772, %v770
    %v885 = vpack.c.b16 %v775, %v773
    %v886 = vpack.c.b16 %v776, %v774
    %v887 = vpack.c.b16 %v779, %v777
    %v888 = vpack.c.b16 %v780, %v778
    %v889 = vpack.c.b16 %v783, %v781
    %v890 = vpack.c.b16 %v784, %v782
    %v891 = vpack.c.b16 %v787, %v785
    %v892 = vpack.c.b16 %v788, %v786
    %v893 = vpack.c.b16 %v791, %v789
    %v894 = vpack.c.b16 %v792, %v790
    %v895 = vpack.c.b16 %v795, %v793
    %v896 = vpack.c.b16 %v796, %v794
    %v897 = vpack.c.b16 %v799, %v797
    %v898 = vpack.c.b16 %v800, %v798
    %v899 = vpack.c.b16 %v803, %v801
    %v900 = vpack.c.b16 %v804, %v802
    %v901 = vpack.c.b16 %v807, %v805
    %v902 = vpack.c.b16 %v808, %v806
    %v903 = vpack.c.b16 %v811, %v809
    %v904 = vpack.c.b16 %v812, %v810
    %v905 = vpack.c.b16 %v815, %v813
    %v906 = vpack.c.b16 %v816, %v814
    %v907 = vpack.c.b16 %v819, %v817
    %v908 = vpack.c.b16 %v820, %v818
    %v909 = vpack.c.b16 %v823, %v821
    %v910 = vpack.c.b16 %v824, %v822
    %v911 = vpack.c.b16 %v827, %v825
    %v912 = vpack.c.b16 %v828, %v826
    %v913 = vpack.c.b16 %v831, %v829
    %v914 = vpack.c.b16 %v832, %v830
    %v915 = vpack.c.b16 %v835, %v833
    %v916 = vpack.c.b16 %v836, %v834
    %v917 = vpack.c.b16 %v839, %v837
    %v918 = vpack.c.b16 %v840, %v838
    %v919 = vpack.c.b16 %v843, %v841
    %v920 = vpack.c.b16 %v844, %v842
    %v921 = vpack.c.b16 %v847, %v845
    %v922 = vpack.c.b16 %v848, %v846
    %v923 = vpack.c.b16 %v851, %v849
    %v924 = vpack.c.b16 %v852, %v850
    %v925 = vpack.c.b16 %v855, %v853
    %v926 = vpack.c.b16 %v856, %v854
    %v927 = vpack.c.b16 %v859, %v857
    %v928 = vpack.c.b16 %v860, %v858
    %v929 = vpack.c.b16 %v863, %v861
    %v930 = vpack.c.b16 %v864, %v862
    %v931 = vpack.c.b16 %v867, %v865
    %v932 = vpack.c.b16 %v868, %v866
    %997 = vmatprep.subr.bf16.mxu0 %v870
    %998 = vmatpush1.bf16.msra.mxu0 %v869
    %999 = vmatprep.subr.bf16.mxu0 %v872
    %1000 = vmatpush1.bf16.msra.mxu0 %v871
    %1001 = vmatprep.subr.bf16.mxu0 %v874
    %1002 = vmatpush1.bf16.msra.mxu0 %v873
    %1003 = vmatprep.subr.bf16.mxu0 %v876
    %1004 = vmatpush1.bf16.msra.mxu0 %v875
    %1005 = vmatprep.subr.bf16.mxu0 %v878
    %1006 = vmatpush1.bf16.msra.mxu0 %v877
    %1007 = vmatprep.subr.bf16.mxu0 %v880
    %1008 = vmatpush1.bf16.msra.mxu0 %v879
    %1009 = vmatprep.subr.bf16.mxu0 %v882
    %1010 = vmatpush1.bf16.msra.mxu0 %v881
    %1011 = vmatprep.subr.bf16.mxu0 %v884
    %1012 = vmatpush1.bf16.msra.mxu0 %v883
    %1013 = vmatprep.subr.bf16.mxu0 %v886
    %1014 = vmatpush1.bf16.msra.mxu0 %v885
    %1015 = vmatprep.subr.bf16.mxu0 %v888
    %1016 = vmatpush1.bf16.msra.mxu0 %v887
    %1017 = vmatprep.subr.bf16.mxu0 %v890
    %1018 = vmatpush1.bf16.msra.mxu0 %v889
    %1019 = vmatprep.subr.bf16.mxu0 %v892
    %1020 = vmatpush1.bf16.msra.mxu0 %v891
    %1021 = vmatprep.subr.bf16.mxu0 %v894
    %1022 = vmatpush1.bf16.msra.mxu0 %v893
    %1023 = vmatprep.subr.bf16.mxu0 %v896
    %1024 = vmatpush1.bf16.msra.mxu0 %v895
    %1025 = vmatprep.subr.bf16.mxu0 %v898
    %1026 = vmatpush1.bf16.msra.mxu0 %v897
    %1027 = vmatprep.subr.bf16.mxu0 %v900
    %1028 = vmatpush1.bf16.msra.mxu0 %v899
    %1029 = vmatprep.mubr.bf16.mxu0 %v598
    %1030 = vmatmul.mubr.bf16.gmra.mrb[0].mxu0 %v597
    %v1031 = vpop.f32.mrb[0].mxu0
    %v1032 = vadd.f32 %v670, %v1031
    %v1033 = vpop.f32.mrb[0].mxu0
    %v1034 = vadd.f32 %v674, %v1033
    %v1035 = vpop.f32.mrb[0].mxu0
    %v1036 = vadd.f32 %v670, %v1035
    %v1037 = vpop.f32.mrb[0].mxu0
    %v1038 = vadd.f32 %v674, %v1037
    %1039 = vdwg.mxu0
    %1040 = vmatprep.subr.bf16.mxu0 %v902
    %1041 = vmatpush1.bf16.msra.mxu0 %v901
    %1042 = vmatprep.subr.bf16.mxu0 %v904
    %1043 = vmatpush1.bf16.msra.mxu0 %v903
    %1044 = vmatprep.subr.bf16.mxu0 %v906
    %1045 = vmatpush1.bf16.msra.mxu0 %v905
    %1046 = vmatprep.subr.bf16.mxu0 %v908
    %1047 = vmatpush1.bf16.msra.mxu0 %v907
    %1048 = vmatprep.subr.bf16.mxu0 %v910
    %1049 = vmatpush1.bf16.msra.mxu0 %v909
    %1050 = vmatprep.subr.bf16.mxu0 %v912
    %1051 = vmatpush1.bf16.msra.mxu0 %v911
    %1052 = vmatprep.subr.bf16.mxu0 %v914
    %1053 = vmatpush1.bf16.msra.mxu0 %v913
    %1054 = vmatprep.subr.bf16.mxu0 %v916
    %1055 = vmatpush1.bf16.msra.mxu0 %v915
    %1056 = vmatprep.subr.bf16.mxu0 %v918
    %1057 = vmatpush1.bf16.msra.mxu0 %v917
    %1058 = vmatprep.subr.bf16.mxu0 %v920
    %1059 = vmatpush1.bf16.msra.mxu0 %v919
    %1060 = vmatprep.subr.bf16.mxu0 %v922
    %1061 = vmatpush1.bf16.msra.mxu0 %v921
    %1062 = vmatprep.subr.bf16.mxu0 %v924
    %1063 = vmatpush1.bf16.msra.mxu0 %v923
    %1064 = vmatprep.subr.bf16.mxu0 %v926
    %1065 = vmatpush1.bf16.msra.mxu0 %v925
    %1066 = vmatprep.subr.bf16.mxu0 %v928
    %1067 = vmatpush1.bf16.msra.mxu0 %v927
    %1068 = vmatprep.subr.bf16.mxu0 %v930
    %1069 = vmatpush1.bf16.msra.mxu0 %v929
    %1070 = vmatprep.subr.bf16.mxu0 %v932
    %1071 = vmatpush1.bf16.msra.mxu0 %v931
    %1072 = vmatprep.mubr.bf16.mxu0 %v600
    %1073 = vmatmul.mubr.bf16.gmra.mrb[0].mxu0 %v599
    %v1074 = vpop.f32.mrb[0].mxu0
    %v1075 = vadd.f32 %v1032, %v1074
    %v1076 = vpop.f32.mrb[0].mxu0
    %v1077 = vadd.f32 %v1034, %v1076
    %v1078 = vpop.f32.mrb[0].mxu0
    %v1079 = vadd.f32 %v1036, %v1078
    %v1080 = vpop.f32.mrb[0].mxu0
    %v1081 = vadd.f32 %v1038, %v1080
    %1082 = vdwg.mxu0
    %vm1083 = vcmp.gt.f32.partialorder %v1075, 0.0
    %vm1084 = vcmp.gt.f32.partialorder %v1077, 0.0
    %vm1085 = vcmp.gt.f32.partialorder %v1079, 0.0
    %vm1086 = vcmp.gt.f32.partialorder %v1081, 0.0
    %v1087 = vmul.f32 %v1075, 0.2
    %v1088 = vmul.f32 %v1077, 0.2
    %v1089 = vmul.f32 %v1079, 0.2
    %v1090 = vmul.f32 %v1081, 0.2
    %v1091 = vsel %vm1083, %v1075, %v1087
    %v1092 = vsel %vm1084, %v1077, %v1088
    %v1093 = vsel %vm1085, %v1079, %v1089
    %v1094 = vsel %vm1086, %v1081, %v1090
    %v1095 = vld [vmem:[%s5] sm:$0x3]
    %v1097 = vlaneseq
    %v1098 = vshrl.u32 %v1097, 7
    %v1099 = vsub.s32 0, %v1098
    %v1100 = vrot.slane %v1095, %v1099
    %v1101 = vlaneseq
    %v1102 = vshrl.u32 %v1101, 7
    %v1103 = vsub.s32 1, %v1102
    %v1104 = vrot.slane %v1095, %v1103
    %v1107 = vmul.f32 %v1091, %v1100
    %v1108 = vmul.f32 %v1092, %v1104
    %v1109 = vmul.f32 %v1093, %v1100
    %v1110 = vmul.f32 %v1094, %v1104
    %v1111 = vadd.f32 %v1107, %v1108
    %1112 = vadd.xlane.f32.xlu0 %v1111
    %v1113 = vpop.xlane.xlu0 %1112
    %v1114 = vadd.f32 %v1109, %v1110
    %1115 = vadd.xlane.f32.xlu0 %v1114
    %v1116 = vpop.xlane.xlu0 %1115
    %v1117 = vld [vmem:[#allocation2] sm:$0x1]
    %v1119 = vlaneseq
    %v1120 = vshrl.u32 %v1119, 7
    %v1121 = vsub.s32 0, %v1120
    %v1122 = vrot.slane %v1117, %v1121
    %v1124 = vadd.f32 %v1113, %v1122
    %v1125 = vadd.f32 %v1116, %v1122
    %v1126 = vsub.f32 0.0, %v1124
    %v1127 = vsub.f32 0.0, %v1125
    %v1128 = vmul.f32 %v1126, 1.442695
    %v1129 = vpow.pop %v1128
    %v1130 = vmul.f32 %v1127, 1.442695
    %v1131 = vpow.pop %v1130
    %v1132 = vadd.f32 %v1129, 1.0
    %v1133 = vadd.f32 %v1131, 1.0
    %v1134 = vrcp.pop %v1132
    %v1135 = vrcp.pop %v1133
    %vm1136 = vcmask 7168
    %1137 = vst.msk [vmem:[%s7] sm:$0xff] %vm1136, %v1134
    %1138 = vst.msk [vmem:[%s7 + $0x8] sm:$0xff] %vm1136, %v1135
    // Predicated region
    $region42: #{tpu_custom_call.1} parent=1 // pred_check
      _
    $region43: #{tpu_custom_call.1} parent=1 // pred_check_branch
      %1140 = sbr.rel (0) target = $region45
    $region44: #{tpu_custom_call.1} parent=1 // pred_region
      _
    $region45: #{tpu_custom_call.1} parent=1 // pred_fallthru
      _
    // Predicated region
    $region46: #{tpu_custom_call.1} parent=1 // pred_check
      _
    $region47: #{tpu_custom_call.1} parent=1 // pred_check_branch
      %1142 = sbr.rel (0) target = $region49
    $region48: #{tpu_custom_call.1} parent=1 // pred_region
      _
    $region49: #{tpu_custom_call.1} parent=1 // pred_fallthru
      _
    %1143 = vsyncpa [#allocation4], 1
    %1144 = vsyncpa [#allocation6], 1

</llo_original>
